<compile_context>
chip_gen: v7x
topology: tpu7x:2x2x1
jax: 0.10.0
libtpu: 0.0.40
codegen_flags: <defaults>
</compile_context>

<pallas_src>
import jax
import jax.numpy as jnp
from jax.experimental import pallas as pl
from jax.experimental.pallas import tpu as pltpu


def _gaf_kernel(fd_ref, fi_ref, wd_ref, bd_ref, wi_ref, bi_ref, o_ref):
    # fd_ref / fi_ref / o_ref : (C, S, 128) VMEM tiles -- each channel is a
    #                           full (S, 128) slab (dense vregs, unmasked vst).
    # wd_ref / wi_ref         : (C*C,) f32 in SMEM, row-major PyTorch [out, in].
    # bd_ref / bi_ref         : (C,)   f32 in SMEM.
    C = o_ref.shape[0]

    # Hoist every SMEM scalar read to the top: the unrolled MAC chain below is
    # then a clean vector-only body for the LLO scheduler.
    wd = [wd_ref[k] for k in range(C * C)]
    wi = [wi_ref[k] for k in range(C * C)]
    bd = [bd_ref[c] for c in range(C)]
    bi = [bi_ref[c] for c in range(C)]

    # Load each channel slab once; gate math in f32 even for bf16 activations.
    fd = [fd_ref[c].astype(jnp.float32) for c in range(C)]
    fi = [fi_ref[c].astype(jnp.float32) for c in range(C)]

    for o in range(C):
        # 1x1-conv channel mix on the VPU: 2*C scalar-x-slab MACs per output
        # channel, fully unrolled (C is tiny), hidden under the HBM DMA.
        zd = bd[o] + wd[o * C] * fd[0]
        zi = bi[o] + wi[o * C] * fi[0]
        for c in range(1, C):
            zd = zd + wd[o * C + c] * fd[c]
            zi = zi + wi[o * C + c] * fi[c]
        # EUP-friendly sigmoid: exp + approximate reciprocal both occupy the
        # EUP slot, protecting the thin VALU margin (matters most on v7x).
        gate_d = pl.reciprocal(1.0 + jnp.exp(-zd), approx=True)
        gate_i = pl.reciprocal(1.0 + jnp.exp(-zi), approx=True)
        # Exactly one dense (S, 128) store per output channel per block.
        o_ref[o] = (fd[o] * gate_d + fi[o] * gate_i).astype(o_ref.dtype)


def _choose_sublane_tile(n, r, c, itemsize, target_bytes=1 << 20):
    """Sublane extent S of the (C, S, 128) activation block.

    S is a multiple of the dtype's native sublane pack (8 f32 / 16 bf16 /
    32 int8) unless it equals the full row extent, sized for ~target_bytes of
    activation per stream per step, and shrunk if needed so megacore gets at
    least ~8 grid steps to split.
    """
    sub = max(8, 32 // max(1, itemsize))
    max_s = max(sub, (target_bytes // (c * 128 * itemsize)) // sub * sub)
    s = r if r <= max_s else max_s            # full dim is always legal
    while s > sub and n * (-(-r // s)) < 8:   # keep both TCs busy on v7x
        new_s = max(sub, (s // 2) // sub * sub)
        if new_s == s:
            break
        s = new_s
    return s


@jax.jit
def gaf_block_forward(f_depth, f_inertial, w_depth, b_depth, w_inertial, b_inertial):
    """f_depth, f_inertial: NCHW.  w_*: (C_out, C_in) from the (C,C,1,1) conv
    weight; b_*: (C,).  Returns NCHW in the activations' dtype."""
    N, C, H, W = f_depth.shape
    HW = H * W

    fd = f_depth.reshape(N, C, HW)
    fi = f_inertial.reshape(N, C, HW)

    # Lane-dense layout: spatial axis -> (rows, 128).  Pad only when H*W is
    # not a multiple of 128 (elementwise op; padded lanes are sliced off).
    pad = (-HW) % 128
    if pad:
        fd = jnp.pad(fd, ((0, 0), (0, 0), (0, pad)))
        fi = jnp.pad(fi, ((0, 0), (0, 0), (0, pad)))
    HWp = HW + pad
    R = HWp // 128
    fd = fd.reshape(N, C, R, 128)
    fi = fi.reshape(N, C, R, 128)

    itemsize = jnp.dtype(f_depth.dtype).itemsize
    S = _choose_sublane_tile(N, R, C, itemsize)
    grid = (N, pl.cdiv(R, S))   # partial last block is masked by Pallas

    # Tiny parameters -> SMEM for the whole call (flattened 1-D to avoid the
    # 2-D SMEM [8,128] padding).
    wd = jnp.asarray(w_depth, jnp.float32).reshape(C * C)
    wi = jnp.asarray(w_inertial, jnp.float32).reshape(C * C)
    bd = jnp.asarray(b_depth, jnp.float32).reshape(C)
    bi = jnp.asarray(b_inertial, jnp.float32).reshape(C)

    act_spec = pl.BlockSpec((None, C, S, 128), lambda n, t: (n, 0, t, 0))
    smem_spec = pl.BlockSpec(memory_space=pltpu.MemorySpace.SMEM)

    out = pl.pallas_call(
        _gaf_kernel,
        out_shape=jax.ShapeDtypeStruct((N, C, R, 128), f_depth.dtype),
        grid_spec=pltpu.PrefetchScalarGridSpec(
            num_scalar_prefetch=0,
            grid=grid,
            in_specs=[
                act_spec,    # f_depth block    (C, S, 128)
                act_spec,    # f_inertial block (C, S, 128)
                smem_spec,   # w_depth    (C*C,) in SMEM, resident
                smem_spec,   # b_depth    (C,)   in SMEM, resident
                smem_spec,   # w_inertial (C*C,) in SMEM, resident
                smem_spec,   # b_inertial (C,)   in SMEM, resident
            ],
            out_specs=pl.BlockSpec((None, C, S, 128), lambda n, t: (n, 0, t, 0)),
        ),
        compiler_params=pltpu.CompilerParams(
            dimension_semantics=("parallel", "parallel")),
    )(fd, fi, wd, bd, wi, bi)

    out = out.reshape(N, C, HWp)
    if pad:
        out = out[:, :, :HW]
    return out.reshape(N, C, H, W)


def _reference(f_depth, f_inertial, w_d, b_d, w_i, b_i):
    # Pure-JAX reference mirroring the PyTorch forward (NCHW, 1x1 convs).
    def conv1x1(x, w, b):
        return jnp.einsum("nchw,oc->nohw", x, w) + b[None, :, None, None]
    gd = jax.nn.sigmoid(conv1x1(f_depth, w_d, b_d))
    gi = jax.nn.sigmoid(conv1x1(f_inertial, w_i, b_i))
    return f_depth * gd + f_inertial * gi


if __name__ == "__main__":
    key = jax.random.PRNGKey(0)
    k1, k2, k3, k4, k5, k6 = jax.random.split(key, 6)

    N, C, H, W = 2, 4, 16, 16  # small shapes consistent with the module

    f_depth = jax.random.normal(k1, (N, C, H, W), jnp.float32)
    f_inertial = jax.random.normal(k2, (N, C, H, W), jnp.float32)

    # Deterministic init (mimics PyTorch Conv2d uniform bound 1/sqrt(fan_in)).
    bound = 1.0 / jnp.sqrt(jnp.float32(C))
    w_depth = jax.random.uniform(k3, (C, C), jnp.float32, -bound, bound)
    b_depth = jax.random.uniform(k4, (C,), jnp.float32, -bound, bound)
    w_inertial = jax.random.uniform(k5, (C, C), jnp.float32, -bound, bound)
    b_inertial = jax.random.uniform(k6, (C,), jnp.float32, -bound, bound)

    out = gaf_block_forward(f_depth, f_inertial,
                            w_depth, b_depth, w_inertial, b_inertial)
    out = jax.block_until_ready(out)

    ref = _reference(f_depth, f_inertial, w_depth, b_depth, w_inertial, b_inertial)
    assert out.shape == (N, C, H, W), out.shape
    max_err = float(jnp.max(jnp.abs(out - ref)))
    # Tolerance accounts for the approximate EUP reciprocal in the gate.
    assert jnp.allclose(out, ref, atol=5e-3, rtol=5e-3), max_err

    print("KERNEL_OK")
</pallas_src>

<mosaic_0001>
module attributes {stable_mosaic.version = 11 : i64} {
  func.func @_gaf_kernel(%arg0: i32, %arg1: i32, %arg2: memref<1x4x2x128xf32, #tpu.memory_space<vmem>>, %arg3: memref<1x4x2x128xf32, #tpu.memory_space<vmem>>, %arg4: memref<16xf32, #tpu.memory_space<smem>>, %arg5: memref<4xf32, #tpu.memory_space<smem>>, %arg6: memref<16xf32, #tpu.memory_space<smem>>, %arg7: memref<4xf32, #tpu.memory_space<smem>>, %arg8: memref<1x4x2x128xf32, #tpu.memory_space<vmem>>) attributes {dimension_semantics = [#tpu.dimension_semantics<parallel>, #tpu.dimension_semantics<parallel>], iteration_bounds = array<i64: 2, 1>, scalar_prefetch = 0 : i64, scratch_operands = 0 : i64, tpu.core_type = #tpu.core_type<tc>, window_params = [{transform_indices = @transform_0, window_bounds = array<i64: 1, 4, 2, 128>}, {transform_indices = @transform_1, window_bounds = array<i64: 1, 4, 2, 128>}, {transform_indices = @transform_2, window_bounds = array<i64: 16>}, {transform_indices = @transform_3, window_bounds = array<i64: 4>}, {transform_indices = @transform_4, window_bounds = array<i64: 16>}, {transform_indices = @transform_5, window_bounds = array<i64: 4>}, {transform_indices = @transform_6, window_bounds = array<i64: 1, 4, 2, 128>}]} {
    %c0 = arith.constant 0 : index
    %0 = memref.load %arg4[%c0] : memref<16xf32, #tpu.memory_space<smem>>
    %c1 = arith.constant 1 : index
    %1 = memref.load %arg4[%c1] : memref<16xf32, #tpu.memory_space<smem>>
    %c2 = arith.constant 2 : index
    %2 = memref.load %arg4[%c2] : memref<16xf32, #tpu.memory_space<smem>>
    %c3 = arith.constant 3 : index
    %3 = memref.load %arg4[%c3] : memref<16xf32, #tpu.memory_space<smem>>
    %c4 = arith.constant 4 : index
    %4 = memref.load %arg4[%c4] : memref<16xf32, #tpu.memory_space<smem>>
    %c5 = arith.constant 5 : index
    %5 = memref.load %arg4[%c5] : memref<16xf32, #tpu.memory_space<smem>>
    %c6 = arith.constant 6 : index
    %6 = memref.load %arg4[%c6] : memref<16xf32, #tpu.memory_space<smem>>
    %c7 = arith.constant 7 : index
    %7 = memref.load %arg4[%c7] : memref<16xf32, #tpu.memory_space<smem>>
    %c8 = arith.constant 8 : index
    %8 = memref.load %arg4[%c8] : memref<16xf32, #tpu.memory_space<smem>>
    %c9 = arith.constant 9 : index
    %9 = memref.load %arg4[%c9] : memref<16xf32, #tpu.memory_space<smem>>
    %c10 = arith.constant 10 : index
    %10 = memref.load %arg4[%c10] : memref<16xf32, #tpu.memory_space<smem>>
    %c11 = arith.constant 11 : index
    %11 = memref.load %arg4[%c11] : memref<16xf32, #tpu.memory_space<smem>>
    %c12 = arith.constant 12 : index
    %12 = memref.load %arg4[%c12] : memref<16xf32, #tpu.memory_space<smem>>
    %c13 = arith.constant 13 : index
    %13 = memref.load %arg4[%c13] : memref<16xf32, #tpu.memory_space<smem>>
    %c14 = arith.constant 14 : index
    %14 = memref.load %arg4[%c14] : memref<16xf32, #tpu.memory_space<smem>>
    %c15 = arith.constant 15 : index
    %15 = memref.load %arg4[%c15] : memref<16xf32, #tpu.memory_space<smem>>
    %c0_0 = arith.constant 0 : index
    %16 = memref.load %arg6[%c0_0] : memref<16xf32, #tpu.memory_space<smem>>
    %c1_1 = arith.constant 1 : index
    %17 = memref.load %arg6[%c1_1] : memref<16xf32, #tpu.memory_space<smem>>
    %c2_2 = arith.constant 2 : index
    %18 = memref.load %arg6[%c2_2] : memref<16xf32, #tpu.memory_space<smem>>
    %c3_3 = arith.constant 3 : index
    %19 = memref.load %arg6[%c3_3] : memref<16xf32, #tpu.memory_space<smem>>
    %c4_4 = arith.constant 4 : index
    %20 = memref.load %arg6[%c4_4] : memref<16xf32, #tpu.memory_space<smem>>
    %c5_5 = arith.constant 5 : index
    %21 = memref.load %arg6[%c5_5] : memref<16xf32, #tpu.memory_space<smem>>
    %c6_6 = arith.constant 6 : index
    %22 = memref.load %arg6[%c6_6] : memref<16xf32, #tpu.memory_space<smem>>
    %c7_7 = arith.constant 7 : index
    %23 = memref.load %arg6[%c7_7] : memref<16xf32, #tpu.memory_space<smem>>
    %c8_8 = arith.constant 8 : index
    %24 = memref.load %arg6[%c8_8] : memref<16xf32, #tpu.memory_space<smem>>
    %c9_9 = arith.constant 9 : index
    %25 = memref.load %arg6[%c9_9] : memref<16xf32, #tpu.memory_space<smem>>
    %c10_10 = arith.constant 10 : index
    %26 = memref.load %arg6[%c10_10] : memref<16xf32, #tpu.memory_space<smem>>
    %c11_11 = arith.constant 11 : index
    %27 = memref.load %arg6[%c11_11] : memref<16xf32, #tpu.memory_space<smem>>
    %c12_12 = arith.constant 12 : index
    %28 = memref.load %arg6[%c12_12] : memref<16xf32, #tpu.memory_space<smem>>
    %c13_13 = arith.constant 13 : index
    %29 = memref.load %arg6[%c13_13] : memref<16xf32, #tpu.memory_space<smem>>
    %c14_14 = arith.constant 14 : index
    %30 = memref.load %arg6[%c14_14] : memref<16xf32, #tpu.memory_space<smem>>
    %c15_15 = arith.constant 15 : index
    %31 = memref.load %arg6[%c15_15] : memref<16xf32, #tpu.memory_space<smem>>
    %c0_16 = arith.constant 0 : index
    %32 = memref.load %arg5[%c0_16] : memref<4xf32, #tpu.memory_space<smem>>
    %c1_17 = arith.constant 1 : index
    %33 = memref.load %arg5[%c1_17] : memref<4xf32, #tpu.memory_space<smem>>
    %c2_18 = arith.constant 2 : index
    %34 = memref.load %arg5[%c2_18] : memref<4xf32, #tpu.memory_space<smem>>
    %c3_19 = arith.constant 3 : index
    %35 = memref.load %arg5[%c3_19] : memref<4xf32, #tpu.memory_space<smem>>
    %c0_20 = arith.constant 0 : index
    %36 = memref.load %arg7[%c0_20] : memref<4xf32, #tpu.memory_space<smem>>
    %c1_21 = arith.constant 1 : index
    %37 = memref.load %arg7[%c1_21] : memref<4xf32, #tpu.memory_space<smem>>
    %c2_22 = arith.constant 2 : index
    %38 = memref.load %arg7[%c2_22] : memref<4xf32, #tpu.memory_space<smem>>
    %c3_23 = arith.constant 3 : index
    %39 = memref.load %arg7[%c3_23] : memref<4xf32, #tpu.memory_space<smem>>
    %c0_24 = arith.constant 0 : index
    %c0_25 = arith.constant 0 : index
    %c0_26 = arith.constant 0 : index
    %c0_27 = arith.constant 0 : index
    %40 = vector.load %arg2[%c0_24, %c0_25, %c0_26, %c0_27] : memref<1x4x2x128xf32, #tpu.memory_space<vmem>>, vector<1x1x2x128xf32>
    %41 = vector.shape_cast %40 : vector<1x1x2x128xf32> to vector<2x128xf32>
    %c0_28 = arith.constant 0 : index
    %c1_29 = arith.constant 1 : index
    %c0_30 = arith.constant 0 : index
    %c0_31 = arith.constant 0 : index
    %42 = vector.load %arg2[%c0_28, %c1_29, %c0_30, %c0_31] : memref<1x4x2x128xf32, #tpu.memory_space<vmem>>, vector<1x1x2x128xf32>
    %43 = vector.shape_cast %42 : vector<1x1x2x128xf32> to vector<2x128xf32>
    %c0_32 = arith.constant 0 : index
    %c2_33 = arith.constant 2 : index
    %c0_34 = arith.constant 0 : index
    %c0_35 = arith.constant 0 : index
    %44 = vector.load %arg2[%c0_32, %c2_33, %c0_34, %c0_35] : memref<1x4x2x128xf32, #tpu.memory_space<vmem>>, vector<1x1x2x128xf32>
    %45 = vector.shape_cast %44 : vector<1x1x2x128xf32> to vector<2x128xf32>
    %c0_36 = arith.constant 0 : index
    %c3_37 = arith.constant 3 : index
    %c0_38 = arith.constant 0 : index
    %c0_39 = arith.constant 0 : index
    %46 = vector.load %arg2[%c0_36, %c3_37, %c0_38, %c0_39] : memref<1x4x2x128xf32, #tpu.memory_space<vmem>>, vector<1x1x2x128xf32>
    %47 = vector.shape_cast %46 : vector<1x1x2x128xf32> to vector<2x128xf32>
    %c0_40 = arith.constant 0 : index
    %c0_41 = arith.constant 0 : index
    %c0_42 = arith.constant 0 : index
    %c0_43 = arith.constant 0 : index
    %48 = vector.load %arg3[%c0_40, %c0_41, %c0_42, %c0_43] : memref<1x4x2x128xf32, #tpu.memory_space<vmem>>, vector<1x1x2x128xf32>
    %49 = vector.shape_cast %48 : vector<1x1x2x128xf32> to vector<2x128xf32>
    %c0_44 = arith.constant 0 : index
    %c1_45 = arith.constant 1 : index
    %c0_46 = arith.constant 0 : index
    %c0_47 = arith.constant 0 : index
    %50 = vector.load %arg3[%c0_44, %c1_45, %c0_46, %c0_47] : memref<1x4x2x128xf32, #tpu.memory_space<vmem>>, vector<1x1x2x128xf32>
    %51 = vector.shape_cast %50 : vector<1x1x2x128xf32> to vector<2x128xf32>
    %c0_48 = arith.constant 0 : index
    %c2_49 = arith.constant 2 : index
    %c0_50 = arith.constant 0 : index
    %c0_51 = arith.constant 0 : index
    %52 = vector.load %arg3[%c0_48, %c2_49, %c0_50, %c0_51] : memref<1x4x2x128xf32, #tpu.memory_space<vmem>>, vector<1x1x2x128xf32>
    %53 = vector.shape_cast %52 : vector<1x1x2x128xf32> to vector<2x128xf32>
    %c0_52 = arith.constant 0 : index
    %c3_53 = arith.constant 3 : index
    %c0_54 = arith.constant 0 : index
    %c0_55 = arith.constant 0 : index
    %54 = vector.load %arg3[%c0_52, %c3_53, %c0_54, %c0_55] : memref<1x4x2x128xf32, #tpu.memory_space<vmem>>, vector<1x1x2x128xf32>
    %55 = vector.shape_cast %54 : vector<1x1x2x128xf32> to vector<2x128xf32>
    %56 = vector.broadcast %0 : f32 to vector<2x128xf32>
    %57 = arith.mulf %56, %41 : vector<2x128xf32>
    %58 = vector.broadcast %32 : f32 to vector<2x128xf32>
    %59 = arith.addf %58, %57 : vector<2x128xf32>
    %60 = vector.broadcast %16 : f32 to vector<2x128xf32>
    %61 = arith.mulf %60, %49 : vector<2x128xf32>
    %62 = vector.broadcast %36 : f32 to vector<2x128xf32>
    %63 = arith.addf %62, %61 : vector<2x128xf32>
    %64 = vector.broadcast %1 : f32 to vector<2x128xf32>
    %65 = arith.mulf %64, %43 : vector<2x128xf32>
    %66 = arith.addf %59, %65 : vector<2x128xf32>
    %67 = vector.broadcast %17 : f32 to vector<2x128xf32>
    %68 = arith.mulf %67, %51 : vector<2x128xf32>
    %69 = arith.addf %63, %68 : vector<2x128xf32>
    %70 = vector.broadcast %2 : f32 to vector<2x128xf32>
    %71 = arith.mulf %70, %45 : vector<2x128xf32>
    %72 = arith.addf %66, %71 : vector<2x128xf32>
    %73 = vector.broadcast %18 : f32 to vector<2x128xf32>
    %74 = arith.mulf %73, %53 : vector<2x128xf32>
    %75 = arith.addf %69, %74 : vector<2x128xf32>
    %76 = vector.broadcast %3 : f32 to vector<2x128xf32>
    %77 = arith.mulf %76, %47 : vector<2x128xf32>
    %78 = arith.addf %72, %77 : vector<2x128xf32>
    %79 = vector.broadcast %19 : f32 to vector<2x128xf32>
    %80 = arith.mulf %79, %55 : vector<2x128xf32>
    %81 = arith.addf %75, %80 : vector<2x128xf32>
    %cst = arith.constant 0.000000e+00 : f32
    %82 = vector.broadcast %cst : f32 to vector<2x128xf32>
    %83 = arith.subf %82, %78 : vector<2x128xf32>
    %84 = math.exp %83 : vector<2x128xf32>
    %cst_56 = arith.constant 1.000000e+00 : f32
    %85 = vector.broadcast %cst_56 : f32 to vector<2x128xf32>
    %86 = arith.addf %85, %84 : vector<2x128xf32>
    %87 = tpu.reciprocal %86 {approx = true} : vector<2x128xf32> -> vector<2x128xf32>
    %cst_57 = arith.constant 0.000000e+00 : f32
    %88 = vector.broadcast %cst_57 : f32 to vector<2x128xf32>
    %89 = arith.subf %88, %81 : vector<2x128xf32>
    %90 = math.exp %89 : vector<2x128xf32>
    %cst_58 = arith.constant 1.000000e+00 : f32
    %91 = vector.broadcast %cst_58 : f32 to vector<2x128xf32>
    %92 = arith.addf %91, %90 : vector<2x128xf32>
    %93 = tpu.reciprocal %92 {approx = true} : vector<2x128xf32> -> vector<2x128xf32>
    %94 = arith.mulf %41, %87 : vector<2x128xf32>
    %95 = arith.mulf %49, %93 : vector<2x128xf32>
    %96 = arith.addf %94, %95 : vector<2x128xf32>
    %c0_59 = arith.constant 0 : index
    %c0_60 = arith.constant 0 : index
    %c0_61 = arith.constant 0 : index
    %c0_62 = arith.constant 0 : index
    %97 = vector.load %arg8[%c0_59, %c0_60, %c0_61, %c0_62] : memref<1x4x2x128xf32, #tpu.memory_space<vmem>>, vector<1x1x2x128xf32>
    %98 = vector.shape_cast %97 : vector<1x1x2x128xf32> to vector<2x128xf32>
    %99 = vector.shape_cast %96 : vector<2x128xf32> to vector<1x1x2x128xf32>
    tpu.vector_store %arg8[%c0_59, %c0_60, %c0_61, %c0_62], %99 {strides = array<i32>} : memref<1x4x2x128xf32, #tpu.memory_space<vmem>>, vector<1x1x2x128xf32>,
    %100 = vector.broadcast %4 : f32 to vector<2x128xf32>
    %101 = arith.mulf %100, %41 : vector<2x128xf32>
    %102 = vector.broadcast %33 : f32 to vector<2x128xf32>
    %103 = arith.addf %102, %101 : vector<2x128xf32>
    %104 = vector.broadcast %20 : f32 to vector<2x128xf32>
    %105 = arith.mulf %104, %49 : vector<2x128xf32>
    %106 = vector.broadcast %37 : f32 to vector<2x128xf32>
    %107 = arith.addf %106, %105 : vector<2x128xf32>
    %108 = vector.broadcast %5 : f32 to vector<2x128xf32>
    %109 = arith.mulf %108, %43 : vector<2x128xf32>
    %110 = arith.addf %103, %109 : vector<2x128xf32>
    %111 = vector.broadcast %21 : f32 to vector<2x128xf32>
    %112 = arith.mulf %111, %51 : vector<2x128xf32>
    %113 = arith.addf %107, %112 : vector<2x128xf32>
    %114 = vector.broadcast %6 : f32 to vector<2x128xf32>
    %115 = arith.mulf %114, %45 : vector<2x128xf32>
    %116 = arith.addf %110, %115 : vector<2x128xf32>
    %117 = vector.broadcast %22 : f32 to vector<2x128xf32>
    %118 = arith.mulf %117, %53 : vector<2x128xf32>
    %119 = arith.addf %113, %118 : vector<2x128xf32>
    %120 = vector.broadcast %7 : f32 to vector<2x128xf32>
    %121 = arith.mulf %120, %47 : vector<2x128xf32>
    %122 = arith.addf %116, %121 : vector<2x128xf32>
    %123 = vector.broadcast %23 : f32 to vector<2x128xf32>
    %124 = arith.mulf %123, %55 : vector<2x128xf32>
    %125 = arith.addf %119, %124 : vector<2x128xf32>
    %cst_63 = arith.constant 0.000000e+00 : f32
    %126 = vector.broadcast %cst_63 : f32 to vector<2x128xf32>
    %127 = arith.subf %126, %122 : vector<2x128xf32>
    %128 = math.exp %127 : vector<2x128xf32>
    %cst_64 = arith.constant 1.000000e+00 : f32
    %129 = vector.broadcast %cst_64 : f32 to vector<2x128xf32>
    %130 = arith.addf %129, %128 : vector<2x128xf32>
    %131 = tpu.reciprocal %130 {approx = true} : vector<2x128xf32> -> vector<2x128xf32>
    %cst_65 = arith.constant 0.000000e+00 : f32
    %132 = vector.broadcast %cst_65 : f32 to vector<2x128xf32>
    %133 = arith.subf %132, %125 : vector<2x128xf32>
    %134 = math.exp %133 : vector<2x128xf32>
    %cst_66 = arith.constant 1.000000e+00 : f32
    %135 = vector.broadcast %cst_66 : f32 to vector<2x128xf32>
    %136 = arith.addf %135, %134 : vector<2x128xf32>
    %137 = tpu.reciprocal %136 {approx = true} : vector<2x128xf32> -> vector<2x128xf32>
    %138 = arith.mulf %43, %131 : vector<2x128xf32>
    %139 = arith.mulf %51, %137 : vector<2x128xf32>
    %140 = arith.addf %138, %139 : vector<2x128xf32>
    %c0_67 = arith.constant 0 : index
    %c1_68 = arith.constant 1 : index
    %c0_69 = arith.constant 0 : index
    %c0_70 = arith.constant 0 : index
    %141 = vector.load %arg8[%c0_67, %c1_68, %c0_69, %c0_70] : memref<1x4x2x128xf32, #tpu.memory_space<vmem>>, vector<1x1x2x128xf32>
    %142 = vector.shape_cast %141 : vector<1x1x2x128xf32> to vector<2x128xf32>
    %143 = vector.shape_cast %140 : vector<2x128xf32> to vector<1x1x2x128xf32>
    tpu.vector_store %arg8[%c0_67, %c1_68, %c0_69, %c0_70], %143 {strides = array<i32>} : memref<1x4x2x128xf32, #tpu.memory_space<vmem>>, vector<1x1x2x128xf32>,
    %144 = vector.broadcast %8 : f32 to vector<2x128xf32>
    %145 = arith.mulf %144, %41 : vector<2x128xf32>
    %146 = vector.broadcast %34 : f32 to vector<2x128xf32>
    %147 = arith.addf %146, %145 : vector<2x128xf32>
    %148 = vector.broadcast %24 : f32 to vector<2x128xf32>
    %149 = arith.mulf %148, %49 : vector<2x128xf32>
    %150 = vector.broadcast %38 : f32 to vector<2x128xf32>
    %151 = arith.addf %150, %149 : vector<2x128xf32>
    %152 = vector.broadcast %9 : f32 to vector<2x128xf32>
    %153 = arith.mulf %152, %43 : vector<2x128xf32>
    %154 = arith.addf %147, %153 : vector<2x128xf32>
    %155 = vector.broadcast %25 : f32 to vector<2x128xf32>
    %156 = arith.mulf %155, %51 : vector<2x128xf32>
    %157 = arith.addf %151, %156 : vector<2x128xf32>
    %158 = vector.broadcast %10 : f32 to vector<2x128xf32>
    %159 = arith.mulf %158, %45 : vector<2x128xf32>
    %160 = arith.addf %154, %159 : vector<2x128xf32>
    %161 = vector.broadcast %26 : f32 to vector<2x128xf32>
    %162 = arith.mulf %161, %53 : vector<2x128xf32>
    %163 = arith.addf %157, %162 : vector<2x128xf32>
    %164 = vector.broadcast %11 : f32 to vector<2x128xf32>
    %165 = arith.mulf %164, %47 : vector<2x128xf32>
    %166 = arith.addf %160, %165 : vector<2x128xf32>
    %167 = vector.broadcast %27 : f32 to vector<2x128xf32>
    %168 = arith.mulf %167, %55 : vector<2x128xf32>
    %169 = arith.addf %163, %168 : vector<2x128xf32>
    %cst_71 = arith.constant 0.000000e+00 : f32
    %170 = vector.broadcast %cst_71 : f32 to vector<2x128xf32>
    %171 = arith.subf %170, %166 : vector<2x128xf32>
    %172 = math.exp %171 : vector<2x128xf32>
    %cst_72 = arith.constant 1.000000e+00 : f32
    %173 = vector.broadcast %cst_72 : f32 to vector<2x128xf32>
    %174 = arith.addf %173, %172 : vector<2x128xf32>
    %175 = tpu.reciprocal %174 {approx = true} : vector<2x128xf32> -> vector<2x128xf32>
    %cst_73 = arith.constant 0.000000e+00 : f32
    %176 = vector.broadcast %cst_73 : f32 to vector<2x128xf32>
    %177 = arith.subf %176, %169 : vector<2x128xf32>
    %178 = math.exp %177 : vector<2x128xf32>
    %cst_74 = arith.constant 1.000000e+00 : f32
    %179 = vector.broadcast %cst_74 : f32 to vector<2x128xf32>
    %180 = arith.addf %179, %178 : vector<2x128xf32>
    %181 = tpu.reciprocal %180 {approx = true} : vector<2x128xf32> -> vector<2x128xf32>
    %182 = arith.mulf %45, %175 : vector<2x128xf32>
    %183 = arith.mulf %53, %181 : vector<2x128xf32>
    %184 = arith.addf %182, %183 : vector<2x128xf32>
    %c0_75 = arith.constant 0 : index
    %c2_76 = arith.constant 2 : index
    %c0_77 = arith.constant 0 : index
    %c0_78 = arith.constant 0 : index
    %185 = vector.load %arg8[%c0_75, %c2_76, %c0_77, %c0_78] : memref<1x4x2x128xf32, #tpu.memory_space<vmem>>, vector<1x1x2x128xf32>
    %186 = vector.shape_cast %185 : vector<1x1x2x128xf32> to vector<2x128xf32>
    %187 = vector.shape_cast %184 : vector<2x128xf32> to vector<1x1x2x128xf32>
    tpu.vector_store %arg8[%c0_75, %c2_76, %c0_77, %c0_78], %187 {strides = array<i32>} : memref<1x4x2x128xf32, #tpu.memory_space<vmem>>, vector<1x1x2x128xf32>,
    %188 = vector.broadcast %12 : f32 to vector<2x128xf32>
    %189 = arith.mulf %188, %41 : vector<2x128xf32>
    %190 = vector.broadcast %35 : f32 to vector<2x128xf32>
    %191 = arith.addf %190, %189 : vector<2x128xf32>
    %192 = vector.broadcast %28 : f32 to vector<2x128xf32>
    %193 = arith.mulf %192, %49 : vector<2x128xf32>
    %194 = vector.broadcast %39 : f32 to vector<2x128xf32>
    %195 = arith.addf %194, %193 : vector<2x128xf32>
    %196 = vector.broadcast %13 : f32 to vector<2x128xf32>
    %197 = arith.mulf %196, %43 : vector<2x128xf32>
    %198 = arith.addf %191, %197 : vector<2x128xf32>
    %199 = vector.broadcast %29 : f32 to vector<2x128xf32>
    %200 = arith.mulf %199, %51 : vector<2x128xf32>
    %201 = arith.addf %195, %200 : vector<2x128xf32>
    %202 = vector.broadcast %14 : f32 to vector<2x128xf32>
    %203 = arith.mulf %202, %45 : vector<2x128xf32>
    %204 = arith.addf %198, %203 : vector<2x128xf32>
    %205 = vector.broadcast %30 : f32 to vector<2x128xf32>
    %206 = arith.mulf %205, %53 : vector<2x128xf32>
    %207 = arith.addf %201, %206 : vector<2x128xf32>
    %208 = vector.broadcast %15 : f32 to vector<2x128xf32>
    %209 = arith.mulf %208, %47 : vector<2x128xf32>
    %210 = arith.addf %204, %209 : vector<2x128xf32>
    %211 = vector.broadcast %31 : f32 to vector<2x128xf32>
    %212 = arith.mulf %211, %55 : vector<2x128xf32>
    %213 = arith.addf %207, %212 : vector<2x128xf32>
    %cst_79 = arith.constant 0.000000e+00 : f32
    %214 = vector.broadcast %cst_79 : f32 to vector<2x128xf32>
    %215 = arith.subf %214, %210 : vector<2x128xf32>
    %216 = math.exp %215 : vector<2x128xf32>
    %cst_80 = arith.constant 1.000000e+00 : f32
    %217 = vector.broadcast %cst_80 : f32 to vector<2x128xf32>
    %218 = arith.addf %217, %216 : vector<2x128xf32>
    %219 = tpu.reciprocal %218 {approx = true} : vector<2x128xf32> -> vector<2x128xf32>
    %cst_81 = arith.constant 0.000000e+00 : f32
    %220 = vector.broadcast %cst_81 : f32 to vector<2x128xf32>
    %221 = arith.subf %220, %213 : vector<2x128xf32>
    %222 = math.exp %221 : vector<2x128xf32>
    %cst_82 = arith.constant 1.000000e+00 : f32
    %223 = vector.broadcast %cst_82 : f32 to vector<2x128xf32>
    %224 = arith.addf %223, %222 : vector<2x128xf32>
    %225 = tpu.reciprocal %224 {approx = true} : vector<2x128xf32> -> vector<2x128xf32>
    %226 = arith.mulf %47, %219 : vector<2x128xf32>
    %227 = arith.mulf %55, %225 : vector<2x128xf32>
    %228 = arith.addf %226, %227 : vector<2x128xf32>
    %c0_83 = arith.constant 0 : index
    %c3_84 = arith.constant 3 : index
    %c0_85 = arith.constant 0 : index
    %c0_86 = arith.constant 0 : index
    %229 = vector.load %arg8[%c0_83, %c3_84, %c0_85, %c0_86] : memref<1x4x2x128xf32, #tpu.memory_space<vmem>>, vector<1x1x2x128xf32>
    %230 = vector.shape_cast %229 : vector<1x1x2x128xf32> to vector<2x128xf32>
    %231 = vector.shape_cast %228 : vector<2x128xf32> to vector<1x1x2x128xf32>
    tpu.vector_store %arg8[%c0_83, %c3_84, %c0_85, %c0_86], %231 {strides = array<i32>} : memref<1x4x2x128xf32, #tpu.memory_space<vmem>>, vector<1x1x2x128xf32>,
    return
  }
  func.func @transform_0(%arg0: i32, %arg1: i32) -> (i32, i32, i32, i32) {
    %c0_i32 = arith.constant 0 : i32
    %c0_i32_0 = arith.constant 0 : i32
    %c0_i32_1 = arith.constant 0 : i32
    return %arg0, %c0_i32, %arg1, %c0_i32_0 : i32, i32, i32, i32
  }
  func.func @transform_1(%arg0: i32, %arg1: i32) -> (i32, i32, i32, i32) {
    %c0_i32 = arith.constant 0 : i32
    %c0_i32_0 = arith.constant 0 : i32
    %c0_i32_1 = arith.constant 0 : i32
    return %arg0, %c0_i32, %arg1, %c0_i32_0 : i32, i32, i32, i32
  }
  func.func @transform_2(%arg0: i32, %arg1: i32) -> i32 {
    %c0_i32 = arith.constant 0 : i32
    %c0_i32_0 = arith.constant 0 : i32
    return %c0_i32 : i32
  }
  func.func @transform_3(%arg0: i32, %arg1: i32) -> i32 {
    %c0_i32 = arith.constant 0 : i32
    %c0_i32_0 = arith.constant 0 : i32
    return %c0_i32 : i32
  }
  func.func @transform_4(%arg0: i32, %arg1: i32) -> i32 {
    %c0_i32 = arith.constant 0 : i32
    %c0_i32_0 = arith.constant 0 : i32
    return %c0_i32 : i32
  }
  func.func @transform_5(%arg0: i32, %arg1: i32) -> i32 {
    %c0_i32 = arith.constant 0 : i32
    %c0_i32_0 = arith.constant 0 : i32
    return %c0_i32 : i32
  }
  func.func @transform_6(%arg0: i32, %arg1: i32) -> (i32, i32, i32, i32) {
    %c0_i32 = arith.constant 0 : i32
    %c0_i32_0 = arith.constant 0 : i32
    %c0_i32_1 = arith.constant 0 : i32
    return %arg0, %c0_i32, %arg1, %c0_i32_0 : i32, i32, i32, i32
  }
}

</mosaic_0001>

<llo_original>
// kernel: gaf_block_forward.1
$region0: #{gaf_block_forward.1}
  #allocation0 [shape = 'u32[]', space=smem, size = 0x4, offset = 0x4, fixed_abs, tag = 'smem constant byte address 0x4 - core index']
  #allocation1 [shape = 'u32[144,128]{1,0:T(1,128)}', space=vmem, size = 0x12000, scoped, tag = 'internal scratch']
  %s0 = inlined_call_operand.vmem [shape: f32[2,4,2,128], index: 0, kind: input, shape index: {}]
  %s1 = inlined_call_operand.vmem [shape: f32[2,4,2,128], index: 1, kind: input, shape index: {}]
  %s2 = inlined_call_operand.vmem [shape: f32[16], index: 2, kind: input, shape index: {}]
  %s3 = inlined_call_operand.vmem [shape: f32[4], index: 3, kind: input, shape index: {}]
  %s4 = inlined_call_operand.vmem [shape: f32[16], index: 4, kind: input, shape index: {}]
  %s5 = inlined_call_operand.vmem [shape: f32[4], index: 5, kind: input, shape index: {}]
  %s6 = inlined_call_operand.vmem [shape: f32[2,4,2,128], index: 6, kind: output, shape index: {}]
  %s7 = sld [smem:[#allocation0]]
  $region73: #{gaf_block_forward.1} parent=0
    _
  %s9 = ssub.s32 1, %s7
  %s10 = scalar_select 0, %s9, %s7
  $region1: #{gaf_block_forward.1} parent=0
    #allocation2 [shape = 'u8[512]{0}', space=smem, size = 0x200, scoped, tag = 'input window, operand 2, single buffered']
    #allocation3 [shape = 's32[2]{0}', space=sflag, size = 0x8, scoped, tag = 'scoped memory for gaf_block_forward.1']
    #allocation4 [shape = 'u8[512]{0}', space=smem, size = 0x200, scoped, tag = 'input window, operand 3, single buffered']
    #allocation5 [shape = 's32[1]{0}', space=sflag, size = 0x4, scoped, tag = 'scoped memory for gaf_block_forward.1']
    #allocation6 [shape = 'u8[512]{0}', space=smem, size = 0x200, scoped, tag = 'input window, operand 4, single buffered']
    #allocation7 [shape = 'u8[512]{0}', space=smem, size = 0x200, scoped, tag = 'input window, operand 5, single buffered']
    #allocation8 [shape = 's32[1]{0}', space=sflag, size = 0x4, scoped, tag = 'scoped memory for gaf_block_forward.1']
    %11 = vsyncpa [#allocation3], 0
    %12 = vsyncpa [#allocation5], 0
    %13 = vsyncpa [#allocation8], 0
    loop: start=0, step=1, limit=4
    $region2: #{gaf_block_forward.1} parent=1 // loop_pre_header
      _
    $region3: #{gaf_block_forward.1} parent=1 // loop_header
      %s15 = sphi 0, %s19
      %p16 = scmp.ge.s32.totalorder %s15, 4
      %s22 = sphi 0, %s34
      %s23 = sphi 0, %s30
      %s24 = sphi 0, %s22
      %s25 = sphi 0, %s23
      %s26 = sphi 0, %s24
      %s27 = sphi 0, %s25
      %s39 = sphi 0, %s41
      %s42 = sphi 0, %s39
      %s43 = sphi 0, %s42
      %s59 = sphi 0, %s43
      %s67 = sphi 0, %s69
      %s70 = sphi 0, %s67
      %s71 = sphi 0, %s70
      %s87 = sphi 0, %s71
      %s91 = sphi 0, %s91
      %s93 = sphi 0, %s91
      %s94 = sphi 0, %s93
      %s108 = sphi 0, %s94
      %s112 = sphi 0, %s112
      %s114 = sphi 0, %s112
      %s115 = sphi 0, %s114
      %s129 = sphi 0, %s115
      %s133 = sphi 0, %s133
      %s135 = sphi 0, %s133
      %s136 = sphi 0, %s135
      %s150 = sphi 0, %s136
      %s154 = sphi 0, %s154
      %s156 = sphi 0, %s154
      %s157 = sphi 0, %s156
      %s171 = sphi 0, %s157
      %s179 = sphi 0, %s181
      %s182 = sphi 0, %s179
      %s183 = sphi 0, %s182
      %s199 = sphi 0, %s183
    $region4: #{gaf_block_forward.1} parent=1 // loop_header_branch
      %18 = sbr.rel (%p16) target = $region8
    $region5: #{gaf_block_forward.1} parent=1 // loop_body
      %s20 = ssub.s32 %s15, 1
      %s21 = ssub.s32 %s15, 2
      %s28 = sadd.s32 1, %s23
      %p29 = scmp.ge.s32.totalorder %s28, 1
      %s30 = scalar_select %p29, 0, %s28
      %s31 = sadd.s32 1, %s22
      %s32 = scalar_select %p29, %s31, %s22
      %p33 = scmp.ge.s32.totalorder %s32, 2
      %s34 = scalar_select %p33, 0, %s32
      %s35 = ssub.s32 %s22, %s34
      %s36 = ssub.s32 %s23, %s30
      %s37 = sor.u32 %s35, %s36
      %p38 = scmp.eq.s32.totalorder %s37, 0
      %s40 = sadd.s32 %s39, 1
      %s41 = scalar_select %p38, %s39, %s40
      %p44 = pneg %p38
      %p45 = scmp.eq.s32.totalorder %s15, 1
      %p46 = por %p44, %p45
      %p47 = scmp.ne.s32.totalorder %s39, %s42
      %p48 = scmp.eq.s32.totalorder %s15, 0
      %p49 = por %p47, %p48
      %p50 = scmp.ne.s32.totalorder %s39, %s42
      %p51 = scmp.eq.s32.totalorder %s20, 1
      %p52 = por %p50, %p51
      %p53 = scmp.ne.s32.totalorder %s42, %s43
      %p54 = scmp.eq.s32.totalorder %s20, 0
      %p55 = por %p53, %p54
      %p56 = scmp.ne.s32.totalorder %s42, %s43
      %p57 = scmp.eq.s32.totalorder %s21, 1
      %p58 = por %p56, %p57
      %p60 = scmp.ne.s32.totalorder %s43, %s59
      %p61 = scmp.eq.s32.totalorder %s21, 0
      %p62 = por %p60, %p61
      %s63 = ssub.s32 %s22, %s34
      %s64 = ssub.s32 %s23, %s30
      %s65 = sor.u32 %s63, %s64
      %p66 = scmp.eq.s32.totalorder %s65, 0
      %s68 = sadd.s32 %s67, 1
      %s69 = scalar_select %p66, %s67, %s68
      %p72 = pneg %p66
      %p73 = scmp.eq.s32.totalorder %s15, 1
      %p74 = por %p72, %p73
      %p75 = scmp.ne.s32.totalorder %s67, %s70
      %p76 = scmp.eq.s32.totalorder %s15, 0
      %p77 = por %p75, %p76
      %p78 = scmp.ne.s32.totalorder %s67, %s70
      %p79 = scmp.eq.s32.totalorder %s20, 1
      %p80 = por %p78, %p79
      %p81 = scmp.ne.s32.totalorder %s70, %s71
      %p82 = scmp.eq.s32.totalorder %s20, 0
      %p83 = por %p81, %p82
      %p84 = scmp.ne.s32.totalorder %s70, %s71
      %p85 = scmp.eq.s32.totalorder %s21, 1
      %p86 = por %p84, %p85
      %p88 = scmp.ne.s32.totalorder %s71, %s87
      %p89 = scmp.eq.s32.totalorder %s21, 0
      %p90 = por %p88, %p89
      %s92 = sadd.s32 %s91, 1
      %p95 = scmp.eq.s32.totalorder %s15, 1
      %p96 = scmp.ne.s32.totalorder %s91, %s93
      %p97 = scmp.eq.s32.totalorder %s15, 0
      %p98 = por %p96, %p97
      %p99 = scmp.ne.s32.totalorder %s91, %s93
      %p100 = scmp.eq.s32.totalorder %s20, 1
      %p101 = por %p99, %p100
      %p102 = scmp.ne.s32.totalorder %s93, %s94
      %p103 = scmp.eq.s32.totalorder %s20, 0
      %p104 = por %p102, %p103
      %p105 = scmp.ne.s32.totalorder %s93, %s94
      %p106 = scmp.eq.s32.totalorder %s21, 1
      %p107 = por %p105, %p106
      %p109 = scmp.ne.s32.totalorder %s94, %s108
      %p110 = scmp.eq.s32.totalorder %s21, 0
      %p111 = por %p109, %p110
      %s113 = sadd.s32 %s112, 1
      %p116 = scmp.eq.s32.totalorder %s15, 1
      %p117 = scmp.ne.s32.totalorder %s112, %s114
      %p118 = scmp.eq.s32.totalorder %s15, 0
      %p119 = por %p117, %p118
      %p120 = scmp.ne.s32.totalorder %s112, %s114
      %p121 = scmp.eq.s32.totalorder %s20, 1
      %p122 = por %p120, %p121
      %p123 = scmp.ne.s32.totalorder %s114, %s115
      %p124 = scmp.eq.s32.totalorder %s20, 0
      %p125 = por %p123, %p124
      %p126 = scmp.ne.s32.totalorder %s114, %s115
      %p127 = scmp.eq.s32.totalorder %s21, 1
      %p128 = por %p126, %p127
      %p130 = scmp.ne.s32.totalorder %s115, %s129
      %p131 = scmp.eq.s32.totalorder %s21, 0
      %p132 = por %p130, %p131
      %s134 = sadd.s32 %s133, 1
      %p137 = scmp.eq.s32.totalorder %s15, 1
      %p138 = scmp.ne.s32.totalorder %s133, %s135
      %p139 = scmp.eq.s32.totalorder %s15, 0
      %p140 = por %p138, %p139
      %p141 = scmp.ne.s32.totalorder %s133, %s135
      %p142 = scmp.eq.s32.totalorder %s20, 1
      %p143 = por %p141, %p142
      %p144 = scmp.ne.s32.totalorder %s135, %s136
      %p145 = scmp.eq.s32.totalorder %s20, 0
      %p146 = por %p144, %p145
      %p147 = scmp.ne.s32.totalorder %s135, %s136
      %p148 = scmp.eq.s32.totalorder %s21, 1
      %p149 = por %p147, %p148
      %p151 = scmp.ne.s32.totalorder %s136, %s150
      %p152 = scmp.eq.s32.totalorder %s21, 0
      %p153 = por %p151, %p152
      %s155 = sadd.s32 %s154, 1
      %p158 = scmp.eq.s32.totalorder %s15, 1
      %p159 = scmp.ne.s32.totalorder %s154, %s156
      %p160 = scmp.eq.s32.totalorder %s15, 0
      %p161 = por %p159, %p160
      %p162 = scmp.ne.s32.totalorder %s154, %s156
      %p163 = scmp.eq.s32.totalorder %s20, 1
      %p164 = por %p162, %p163
      %p165 = scmp.ne.s32.totalorder %s156, %s157
      %p166 = scmp.eq.s32.totalorder %s20, 0
      %p167 = por %p165, %p166
      %p168 = scmp.ne.s32.totalorder %s156, %s157
      %p169 = scmp.eq.s32.totalorder %s21, 1
      %p170 = por %p168, %p169
      %p172 = scmp.ne.s32.totalorder %s157, %s171
      %p173 = scmp.eq.s32.totalorder %s21, 0
      %p174 = por %p172, %p173
      %s175 = ssub.s32 %s22, %s34
      %s176 = ssub.s32 %s23, %s30
      %s177 = sor.u32 %s175, %s176
      %p178 = scmp.eq.s32.totalorder %s177, 0
      %s180 = sadd.s32 %s179, 1
      %s181 = scalar_select %p178, %s179, %s180
      %p184 = pneg %p178
      %p185 = scmp.eq.s32.totalorder %s15, 1
      %p186 = por %p184, %p185
      %p187 = scmp.ne.s32.totalorder %s179, %s182
      %p188 = scmp.eq.s32.totalorder %s15, 0
      %p189 = por %p187, %p188
      %p190 = scmp.ne.s32.totalorder %s179, %s182
      %p191 = scmp.eq.s32.totalorder %s20, 1
      %p192 = por %p190, %p191
      %p193 = scmp.ne.s32.totalorder %s182, %s183
      %p194 = scmp.eq.s32.totalorder %s20, 0
      %p195 = por %p193, %p194
      %p196 = scmp.ne.s32.totalorder %s182, %s183
      %p197 = scmp.eq.s32.totalorder %s21, 1
      %p198 = por %p196, %p197
      %p200 = scmp.ne.s32.totalorder %s183, %s199
      %p201 = scmp.eq.s32.totalorder %s21, 0
      %p202 = por %p200, %p201
      %p203 = scmp.le.s32.totalorder 1, %s15
      %p204 = scmp.lt.s32.totalorder %s15, 3
      %p205 = pnand %p203, %p204
      %p206 = pneg %p205
      // Predicated region
      $region9: #{gaf_block_forward.1} parent=5 // pred_check
        _
      $region10: #{gaf_block_forward.1} parent=5 // pred_check_branch
        %208 = sbr.rel (%p205) target = $region12
      $region11: #{gaf_block_forward.1} parent=5 // pred_region
        %s209 = ssub.s32 %s15, 1
        // Predicated region
        $region13: #{gaf_block_forward.1} parent=11 // pred_check
          %p210 = pneg %p104
        $region14: #{gaf_block_forward.1} parent=11 // pred_check_branch
          %212 = sbr.rel (%p210) target = $region16
        $region15: #{gaf_block_forward.1} parent=11 // pred_region
          %s214 = ssub.s32 16, 16
          %215 = vsyncadd [#allocation3], %s214
          %s217 = sshll.u32 %s2, 4
          %s218 = int_to_ptr.vmem [resolvable:$true] %s217
          %220 = dma.vmem_to_smem %s218, 16, [#allocation2], [#allocation3]
        $region16: #{gaf_block_forward.1} parent=11 // pred_fallthru
          _
        // Predicated region
        $region17: #{gaf_block_forward.1} parent=11 // pred_check
          %p221 = pneg %p125
        $region18: #{gaf_block_forward.1} parent=11 // pred_check_branch
          %223 = sbr.rel (%p221) target = $region20
        $region19: #{gaf_block_forward.1} parent=11 // pred_region
          %s225 = ssub.s32 16, 16
          %226 = vsyncadd [#allocation5], %s225
          %s228 = sshll.u32 %s3, 4
          %s229 = int_to_ptr.vmem [resolvable:$true] %s228
          %231 = dma.vmem_to_smem %s229, 16, [#allocation4], [#allocation5]
        $region20: #{gaf_block_forward.1} parent=11 // pred_fallthru
          _
        // Predicated region
        $region21: #{gaf_block_forward.1} parent=11 // pred_check
          %p232 = pneg %p146
        $region22: #{gaf_block_forward.1} parent=11 // pred_check_branch
          %234 = sbr.rel (%p232) target = $region24
        $region23: #{gaf_block_forward.1} parent=11 // pred_region
          %s236 = ssub.s32 16, 16
          %237 = vsyncadd [#allocation5], %s236
          %s239 = sshll.u32 %s4, 4
          %s240 = int_to_ptr.vmem [resolvable:$true] %s239
          %242 = dma.vmem_to_smem %s240, 16, [#allocation6], [#allocation5]
        $region24: #{gaf_block_forward.1} parent=11 // pred_fallthru
          _
        // Predicated region
        $region25: #{gaf_block_forward.1} parent=11 // pred_check
          %p243 = pneg %p167
        $region26: #{gaf_block_forward.1} parent=11 // pred_check_branch
          %245 = sbr.rel (%p243) target = $region28
        $region27: #{gaf_block_forward.1} parent=11 // pred_region
          %s247 = ssub.s32 16, 16
          %248 = vsyncadd [#allocation8], %s247
          %s250 = sshll.u32 %s5, 4
          %s251 = int_to_ptr.vmem [resolvable:$true] %s250
          %253 = dma.vmem_to_smem %s251, 16, [#allocation7], [#allocation8]
        $region28: #{gaf_block_forward.1} parent=11 // pred_fallthru
          _
      $region12: #{gaf_block_forward.1} parent=5 // pred_fallthru
        _
      %p254 = scmp.lt.s32.totalorder %s15, 2
      // Predicated region
      $region29: #{gaf_block_forward.1} parent=5 // pred_check
        %p255 = pneg %p254
      $region30: #{gaf_block_forward.1} parent=5 // pred_check_branch
        %257 = sbr.rel (%p255) target = $region32
      $region31: #{gaf_block_forward.1} parent=5 // pred_region
        // Predicated region
        $region33: #{gaf_block_forward.1} parent=31 // pred_check
          %p258 = pneg %p49
        $region34: #{gaf_block_forward.1} parent=31 // pred_check_branch
          %260 = sbr.rel (%p258) target = $region36
        $region35: #{gaf_block_forward.1} parent=31 // pred_region
          %p261 = scmp.lt.s32.totalorder %s22, 1
          %s262 = scalar_select %p261, %s22, 1
          %p263 = scmp.lt.s32.totalorder %s23, 0
          %s264 = scalar_select %p263, %s23, 0
          %s265 = smul.addr %s262, 4
          %s266 = sadd.s32 %s264, %s265
          %s267 = smul.addr %s266, 2
          %s268 = scalar_lea.vmem %s0, %s267
        $region36: #{gaf_block_forward.1} parent=31 // pred_fallthru
          _
        // Predicated region
        $region37: #{gaf_block_forward.1} parent=31 // pred_check
          %p269 = pneg %p77
        $region38: #{gaf_block_forward.1} parent=31 // pred_check_branch
          %271 = sbr.rel (%p269) target = $region40
        $region39: #{gaf_block_forward.1} parent=31 // pred_region
          %p272 = scmp.lt.s32.totalorder %s22, 1
          %s273 = scalar_select %p272, %s22, 1
          %p274 = scmp.lt.s32.totalorder %s23, 0
          %s275 = scalar_select %p274, %s23, 0
          %s276 = smul.addr %s273, 4
          %s277 = sadd.s32 %s275, %s276
          %s278 = smul.addr %s277, 2
          %s279 = scalar_lea.vmem %s1, %s278
        $region40: #{gaf_block_forward.1} parent=31 // pred_fallthru
          _
      $region32: #{gaf_block_forward.1} parent=5 // pred_fallthru
        _
      %p280 = scmp.le.s32.totalorder 1, %s15
      %p281 = scmp.lt.s32.totalorder %s15, 3
      %p282 = pnand %p280, %p281
      %p283 = pneg %p282
      // Predicated region
      $region41: #{gaf_block_forward.1} parent=5 // pred_check
        _
      $region42: #{gaf_block_forward.1} parent=5 // pred_check_branch
        %285 = sbr.rel (%p282) target = $region44
      $region43: #{gaf_block_forward.1} parent=5 // pred_region
        %s286 = ssub.s32 %s15, 1
        // Predicated region
        $region45: #{gaf_block_forward.1} parent=43 // pred_check
          %p287 = pneg %p104
        $region46: #{gaf_block_forward.1} parent=43 // pred_check_branch
          %289 = sbr.rel (%p287) target = $region48
        $region47: #{gaf_block_forward.1} parent=43 // pred_region
          %290 = dma.done [#allocation3], 16
        $region48: #{gaf_block_forward.1} parent=43 // pred_fallthru
          _
        // Predicated region
        $region49: #{gaf_block_forward.1} parent=43 // pred_check
          %p291 = pneg %p125
        $region50: #{gaf_block_forward.1} parent=43 // pred_check_branch
          %293 = sbr.rel (%p291) target = $region52
        $region51: #{gaf_block_forward.1} parent=43 // pred_region
          %294 = dma.done [#allocation5], 16
        $region52: #{gaf_block_forward.1} parent=43 // pred_fallthru
          _
        // Predicated region
        $region53: #{gaf_block_forward.1} parent=43 // pred_check
          %p295 = pneg %p146
        $region54: #{gaf_block_forward.1} parent=43 // pred_check_branch
          %297 = sbr.rel (%p295) target = $region56
        $region55: #{gaf_block_forward.1} parent=43 // pred_region
          %298 = dma.done [#allocation5], 16
        $region56: #{gaf_block_forward.1} parent=43 // pred_fallthru
          _
        // Predicated region
        $region57: #{gaf_block_forward.1} parent=43 // pred_check
          %p299 = pneg %p167
        $region58: #{gaf_block_forward.1} parent=43 // pred_check_branch
          %301 = sbr.rel (%p299) target = $region60
        $region59: #{gaf_block_forward.1} parent=43 // pred_region
          %302 = dma.done [#allocation8], 16
        $region60: #{gaf_block_forward.1} parent=43 // pred_fallthru
          _
        %303 = sfence
        %p304 = scmp.lt.s32.totalorder %s24, 1
        %s305 = scalar_select %p304, %s24, 1
        %p306 = scmp.lt.s32.totalorder %s25, 0
        %s307 = scalar_select %p306, %s25, 0
        %s308 = smul.addr %s305, 4
        %s309 = sadd.s32 %s307, %s308
        %s310 = smul.addr %s309, 2
        %s311 = scalar_lea.vmem %s0, %s310
        %p312 = pneg %p55
        %p313 = pneg %p52
        %p314 = scmp.lt.s32.totalorder %s24, 1
        %s315 = scalar_select %p314, %s24, 1
        %p316 = scmp.lt.s32.totalorder %s25, 0
        %s317 = scalar_select %p316, %s25, 0
        %s318 = smul.addr %s315, 4
        %s319 = sadd.s32 %s317, %s318
        %s320 = smul.addr %s319, 2
        %s321 = scalar_lea.vmem %s1, %s320
        %p322 = pneg %p83
        %p323 = pneg %p80
        %p324 = pneg %p104
        %p325 = pneg %p101
        %p326 = pneg %p125
        %p327 = pneg %p122
        %p328 = pneg %p146
        %p329 = pneg %p143
        %p330 = pneg %p167
        %p331 = pneg %p164
        %p332 = pneg %p195
        %p333 = pneg %p192
        %p334 = scmp.lt.s32.totalorder %s24, 1
        %s335 = scalar_select %p334, %s24, 1
        %p336 = scmp.lt.s32.totalorder %s25, 0
        %s337 = scalar_select %p336, %s25, 0
        %s338 = smul.addr %s335, 4
        %s339 = sadd.s32 %s337, %s338
        %s340 = smul.addr %s339, 2
        %s341 = scalar_lea.vmem %s6, %s340
        %p342 = scmp.lt.s32.totalorder %s24, 1
        %s343 = scalar_select %p342, %s24, 1
        %p344 = scmp.lt.s32.totalorder %s25, 0
        %s345 = scalar_select %p344, %s25, 0
        %s346 = smul.addr %s343, 4
        %s347 = sadd.s32 %s345, %s346
        %s348 = smul.addr %s347, 2
        %s349 = scalar_lea.vmem %s0, %s348
        %p350 = scmp.lt.s32.totalorder %s24, 1
        %s351 = scalar_select %p350, %s24, 1
        %p352 = scmp.lt.s32.totalorder %s25, 0
        %s353 = scalar_select %p352, %s25, 0
        %s354 = smul.addr %s351, 4
        %s355 = sadd.s32 %s353, %s354
        %s356 = smul.addr %s355, 2
        %s357 = scalar_lea.vmem %s1, %s356
        %p358 = scmp.lt.s32.totalorder %s24, 1
        %s359 = scalar_select %p358, %s24, 1
        %p360 = scmp.lt.s32.totalorder %s25, 0
        %s361 = scalar_select %p360, %s25, 0
        %s362 = smul.addr %s359, 4
        %s363 = sadd.s32 %s361, %s362
        %s364 = smul.addr %s363, 2
        %s365 = scalar_lea.vmem %s6, %s364
        %s366 = sld [smem:[#allocation2]]
        %s367 = sld [smem:[#allocation2 + $0x1]]
        %s368 = sld [smem:[#allocation2 + $0x2]]
        %s369 = sld [smem:[#allocation2 + $0x3]]
        %s370 = sld [smem:[#allocation2 + $0x4]]
        %s371 = sld [smem:[#allocation2 + $0x5]]
        %s372 = sld [smem:[#allocation2 + $0x6]]
        %s373 = sld [smem:[#allocation2 + $0x7]]
        %s374 = sld [smem:[#allocation2 + $0x8]]
        %s375 = sld [smem:[#allocation2 + $0x9]]
        %s376 = sld [smem:[#allocation2 + $0xa]]
        %s377 = sld [smem:[#allocation2 + $0xb]]
        %s378 = sld [smem:[#allocation2 + $0xc]]
        %s379 = sld [smem:[#allocation2 + $0xd]]
        %s380 = sld [smem:[#allocation2 + $0xe]]
        %s381 = sld [smem:[#allocation2 + $0xf]]
        %s382 = sld [smem:[#allocation6]]
        %s383 = sld [smem:[#allocation6 + $0x1]]
        %s384 = sld [smem:[#allocation6 + $0x2]]
        %s385 = sld [smem:[#allocation6 + $0x3]]
        %s386 = sld [smem:[#allocation6 + $0x4]]
        %s387 = sld [smem:[#allocation6 + $0x5]]
        %s388 = sld [smem:[#allocation6 + $0x6]]
        %s389 = sld [smem:[#allocation6 + $0x7]]
        %s390 = sld [smem:[#allocation6 + $0x8]]
        %s391 = sld [smem:[#allocation6 + $0x9]]
        %s392 = sld [smem:[#allocation6 + $0xa]]
        %s393 = sld [smem:[#allocation6 + $0xb]]
        %s394 = sld [smem:[#allocation6 + $0xc]]
        %s395 = sld [smem:[#allocation6 + $0xd]]
        %s396 = sld [smem:[#allocation6 + $0xe]]
        %s397 = sld [smem:[#allocation6 + $0xf]]
        %s398 = sld [smem:[#allocation4]]
        %s399 = sld [smem:[#allocation4 + $0x1]]
        %s400 = sld [smem:[#allocation4 + $0x2]]
        %s401 = sld [smem:[#allocation4 + $0x3]]
        %s402 = sld [smem:[#allocation7]]
        %s403 = sld [smem:[#allocation7 + $0x1]]
        %s404 = sld [smem:[#allocation7 + $0x2]]
        %s405 = sld [smem:[#allocation7 + $0x3]]
        %v406 = vld [vmem:[%s349] sm:$0x3]
        %s407 = scalar_lea.vmem %s349, 2
        %v408 = vld [vmem:[%s407] sm:$0x3]
        %s409 = scalar_lea.vmem %s349, 4
        %v410 = vld [vmem:[%s409] sm:$0x3]
        %s411 = scalar_lea.vmem %s349, 6
        %v412 = vld [vmem:[%s411] sm:$0x3]
        %v413 = vld [vmem:[%s357] sm:$0x3]
        %s414 = scalar_lea.vmem %s357, 2
        %v415 = vld [vmem:[%s414] sm:$0x3]
        %s416 = scalar_lea.vmem %s357, 4
        %v417 = vld [vmem:[%s416] sm:$0x3]
        %s418 = scalar_lea.vmem %s357, 6
        %v419 = vld [vmem:[%s418] sm:$0x3]
        %v420 = vstv %s366
        %v421 = vmul.f32 %v420, %v406
        %v422 = vstv %s398
        %v423 = vadd.f32 %v422, %v421
        %v424 = vstv %s382
        %v425 = vmul.f32 %v424, %v413
        %v426 = vstv %s402
        %v427 = vadd.f32 %v426, %v425
        %v428 = vstv %s367
        %v429 = vmul.f32 %v428, %v408
        %v430 = vadd.f32 %v423, %v429
        %v431 = vstv %s383
        %v432 = vmul.f32 %v431, %v415
        %v433 = vadd.f32 %v427, %v432
        %v434 = vstv %s368
        %v435 = vmul.f32 %v434, %v410
        %v436 = vadd.f32 %v430, %v435
        %v437 = vstv %s384
        %v438 = vmul.f32 %v437, %v417
        %v439 = vadd.f32 %v433, %v438
        %v440 = vstv %s369
        %v441 = vmul.f32 %v440, %v412
        %v442 = vadd.f32 %v436, %v441
        %v443 = vstv %s385
        %v444 = vmul.f32 %v443, %v419
        %v445 = vadd.f32 %v439, %v444
        %v446 = vsub.f32 0.0, %v442
        %v447 = vmul.f32 %v446, 1.442695
        %v448 = vpow.pop %v447
        %v449 = vadd.f32 %v448, 1.0
        %v450 = vrcp.pop %v449
        %v451 = vsub.f32 0.0, %v445
        %v452 = vmul.f32 %v451, 1.442695
        %v453 = vpow.pop %v452
        %v454 = vadd.f32 %v453, 1.0
        %v455 = vrcp.pop %v454
        %v456 = vmul.f32 %v406, %v450
        %v457 = vmul.f32 %v413, %v455
        %v458 = vadd.f32 %v456, %v457
        %459 = vst [vmem:[%s365] sm:$0x3] %v458
        %v460 = vstv %s370
        %v461 = vmul.f32 %v460, %v406
        %v462 = vstv %s399
        %v463 = vadd.f32 %v462, %v461
        %v464 = vstv %s386
        %v465 = vmul.f32 %v464, %v413
        %v466 = vstv %s403
        %v467 = vadd.f32 %v466, %v465
        %v468 = vstv %s371
        %v469 = vmul.f32 %v468, %v408
        %v470 = vadd.f32 %v463, %v469
        %v471 = vstv %s387
        %v472 = vmul.f32 %v471, %v415
        %v473 = vadd.f32 %v467, %v472
        %v474 = vstv %s372
        %v475 = vmul.f32 %v474, %v410
        %v476 = vadd.f32 %v470, %v475
        %v477 = vstv %s388
        %v478 = vmul.f32 %v477, %v417
        %v479 = vadd.f32 %v473, %v478
        %v480 = vstv %s373
        %v481 = vmul.f32 %v480, %v412
        %v482 = vadd.f32 %v476, %v481
        %v483 = vstv %s389
        %v484 = vmul.f32 %v483, %v419
        %v485 = vadd.f32 %v479, %v484
        %v486 = vsub.f32 0.0, %v482
        %v487 = vmul.f32 %v486, 1.442695
        %v488 = vpow.pop %v487
        %v489 = vadd.f32 %v488, 1.0
        %v490 = vrcp.pop %v489
        %v491 = vsub.f32 0.0, %v485
        %v492 = vmul.f32 %v491, 1.442695
        %v493 = vpow.pop %v492
        %v494 = vadd.f32 %v493, 1.0
        %v495 = vrcp.pop %v494
        %v496 = vmul.f32 %v408, %v490
        %v497 = vmul.f32 %v415, %v495
        %v498 = vadd.f32 %v496, %v497
        %s499 = scalar_lea.vmem %s365, 2
        %500 = vst [vmem:[%s499] sm:$0x3] %v498
        %v501 = vstv %s374
        %v502 = vmul.f32 %v501, %v406
        %v503 = vstv %s400
        %v504 = vadd.f32 %v503, %v502
        %v505 = vstv %s390
        %v506 = vmul.f32 %v505, %v413
        %v507 = vstv %s404
        %v508 = vadd.f32 %v507, %v506
        %v509 = vstv %s375
        %v510 = vmul.f32 %v509, %v408
        %v511 = vadd.f32 %v504, %v510
        %v512 = vstv %s391
        %v513 = vmul.f32 %v512, %v415
        %v514 = vadd.f32 %v508, %v513
        %v515 = vstv %s376
        %v516 = vmul.f32 %v515, %v410
        %v517 = vadd.f32 %v511, %v516
        %v518 = vstv %s392
        %v519 = vmul.f32 %v518, %v417
        %v520 = vadd.f32 %v514, %v519
        %v521 = vstv %s377
        %v522 = vmul.f32 %v521, %v412
        %v523 = vadd.f32 %v517, %v522
        %v524 = vstv %s393
        %v525 = vmul.f32 %v524, %v419
        %v526 = vadd.f32 %v520, %v525
        %v527 = vsub.f32 0.0, %v523
        %v528 = vmul.f32 %v527, 1.442695
        %v529 = vpow.pop %v528
        %v530 = vadd.f32 %v529, 1.0
        %v531 = vrcp.pop %v530
        %v532 = vsub.f32 0.0, %v526
        %v533 = vmul.f32 %v532, 1.442695
        %v534 = vpow.pop %v533
        %v535 = vadd.f32 %v534, 1.0
        %v536 = vrcp.pop %v535
        %v537 = vmul.f32 %v410, %v531
        %v538 = vmul.f32 %v417, %v536
        %v539 = vadd.f32 %v537, %v538
        %s540 = scalar_lea.vmem %s365, 4
        %541 = vst [vmem:[%s540] sm:$0x3] %v539
        %v542 = vstv %s378
        %v543 = vmul.f32 %v542, %v406
        %v544 = vstv %s401
        %v545 = vadd.f32 %v544, %v543
        %v546 = vstv %s394
        %v547 = vmul.f32 %v546, %v413
        %v548 = vstv %s405
        %v549 = vadd.f32 %v548, %v547
        %v550 = vstv %s379
        %v551 = vmul.f32 %v550, %v408
        %v552 = vadd.f32 %v545, %v551
        %v553 = vstv %s395
        %v554 = vmul.f32 %v553, %v415
        %v555 = vadd.f32 %v549, %v554
        %v556 = vstv %s380
        %v557 = vmul.f32 %v556, %v410
        %v558 = vadd.f32 %v552, %v557
        %v559 = vstv %s396
        %v560 = vmul.f32 %v559, %v417
        %v561 = vadd.f32 %v555, %v560
        %v562 = vstv %s381
        %v563 = vmul.f32 %v562, %v412
        %v564 = vadd.f32 %v558, %v563
        %v565 = vstv %s397
        %v566 = vmul.f32 %v565, %v419
        %v567 = vadd.f32 %v561, %v566
        %v568 = vsub.f32 0.0, %v564
        %v569 = vmul.f32 %v568, 1.442695
        %v570 = vpow.pop %v569
        %v571 = vadd.f32 %v570, 1.0
        %v572 = vrcp.pop %v571
        %v573 = vsub.f32 0.0, %v567
        %v574 = vmul.f32 %v573, 1.442695
        %v575 = vpow.pop %v574
        %v576 = vadd.f32 %v575, 1.0
        %v577 = vrcp.pop %v576
        %v578 = vmul.f32 %v412, %v572
        %v579 = vmul.f32 %v419, %v577
        %v580 = vadd.f32 %v578, %v579
        %s581 = scalar_lea.vmem %s365, 6
        %582 = vst [vmem:[%s581] sm:$0x3] %v580
        %p583 = scmp.lt.s32.totalorder %s24, 1
        %s584 = scalar_select %p583, %s24, 1
        %p585 = scmp.lt.s32.totalorder %s25, 0
        %s586 = scalar_select %p585, %s25, 0
        %s587 = smul.addr %s584, 4
        %s588 = sadd.s32 %s586, %s587
        %s589 = smul.addr %s588, 2
        %s590 = scalar_lea.vmem %s6, %s589
        // Predicated region
        $region61: #{gaf_block_forward.1} parent=43 // pred_check
          %p591 = pneg %p192
        $region62: #{gaf_block_forward.1} parent=43 // pred_check_branch
          %593 = sbr.rel (%p591) target = $region64
        $region63: #{gaf_block_forward.1} parent=43 // pred_region
          _
        $region64: #{gaf_block_forward.1} parent=43 // pred_fallthru
          _
      $region44: #{gaf_block_forward.1} parent=5 // pred_fallthru
        _
      %p594 = scmp.le.s32.totalorder 2, %s15
      // Predicated region
      $region65: #{gaf_block_forward.1} parent=5 // pred_check
        %p595 = pneg %p594
      $region66: #{gaf_block_forward.1} parent=5 // pred_check_branch
        %597 = sbr.rel (%p595) target = $region68
      $region67: #{gaf_block_forward.1} parent=5 // pred_region
        %s598 = ssub.s32 %s15, 2
        // Predicated region
        $region69: #{gaf_block_forward.1} parent=67 // pred_check
          %p599 = pneg %p198
        $region70: #{gaf_block_forward.1} parent=67 // pred_check_branch
          %601 = sbr.rel (%p599) target = $region72
        $region71: #{gaf_block_forward.1} parent=67 // pred_region
          %p602 = scmp.lt.s32.totalorder %s26, 1
          %s603 = scalar_select %p602, %s26, 1
          %p604 = scmp.lt.s32.totalorder %s27, 0
          %s605 = scalar_select %p604, %s27, 0
          %s606 = smul.addr %s603, 4
          %s607 = sadd.s32 %s605, %s606
          %s608 = smul.addr %s607, 2
          %s609 = scalar_lea.vmem %s6, %s608
        $region72: #{gaf_block_forward.1} parent=67 // pred_fallthru
          _
      $region68: #{gaf_block_forward.1} parent=5 // pred_fallthru
        _
    $region6: #{gaf_block_forward.1} parent=1 // loop_footer
      %s19 = sadd.s32 1, %s15
    $region7: #{gaf_block_forward.1} parent=1 // loop_footer_branch
      %14 = sbr.rel target = $region3
    $region8: #{gaf_block_forward.1} parent=1 // loop_exit
      _
    %610 = vsyncpa [#allocation3], 1
    %s611 = scalar_lea.sflag [#allocation3], 1
    %612 = vsyncpa %s611, 1
    %613 = vsyncpa [#allocation5], 1
    %614 = vsyncpa [#allocation8], 1

</llo_original>
